<compile_context>
chip_gen: v7x
topology: tpu7x:2x2x1
jax: 0.10.0
libtpu: 0.0.40
codegen_flags: <defaults>
</compile_context>

<pallas_src>
import math

import jax
import jax.numpy as jnp
import numpy as np
from jax.experimental import pallas as pl
from jax.experimental.pallas import tpu as pltpu

# number of baselines = 2, mean=True  ->  scale = 2
LOG_SCALE = math.log(2.0)


def _log_additive_baseline_kernel(zx_ref, w_ref, s_ref, o_ref):
    # zx_ref: (r, 128, D) batch tile (batch rows mapped to (group, lane))
    # w_ref:  (1, 1, D)   Linear(D -> 1) weight row, resident across the grid
    # s_ref:  (2,) SMEM   [linear bias, constant-baseline param]
    # o_ref:  (r, 128)    lane-dense output slab for this batch tile
    zx = zx_ref[...].astype(jnp.float32)
    w = w_ref[...]                                   # broadcasts over (r, 128)
    bias = s_ref[0]
    const = s_ref[1]

    # baselines[1]: LearnedConditionalBaseline == Linear(D -> 1) applied to z_x.
    # N=1 would leave the MXU ~1/256 utilized, so do VPU mul + XLU lane reduce.
    h = jnp.sum(zx * w, axis=-1) + bias              # (r, 128)

    # baselines[0]: ConstantBaseline (scalar), combined with a numerically
    # stable single-exp logaddexp: max(h, c) + log(1 + exp(-|h - c|)).
    lae = jnp.maximum(h, const) + jnp.log(1.0 + jnp.exp(-jnp.abs(h - const)))

    # LogAdditiveBaseline: subtract log(scale)
    o_ref[...] = (lae - LOG_SCALE).astype(o_ref.dtype)


def _round_up(x: int, m: int) -> int:
    return ((x + m - 1) // m) * m


def log_additive_baseline(z_x, w, b, const, *,
                          max_tile_rows: int = 2048,
                          target_tile_bytes: int = 8 * 1024 * 1024):
    """z_x: [B, D]; w: [D, 1]; b: [1] (Linear bias); const: [1] (ConstantBaseline).

    Returns [B, 1] float32: logaddexp(const, z_x @ w + b) - log(2).
    """
    B, D = z_x.shape
    itemsize = jnp.dtype(z_x.dtype).itemsize

    # --- layout plumbing: batch -> (group, lane); pad only to 128 lanes -------
    b_pad = _round_up(B, 128)
    if b_pad != B:
        z_x = jnp.pad(z_x, ((0, b_pad - B), (0, 0)))
    G = b_pad // 128                                 # groups of 128 batch rows

    # --- choose row-tile size in groups (VMEM-budgeted, lane-padded D) --------
    d_pad = _round_up(D, 128)                        # VMEM pads the lane dim
    max_groups = max(1, min(max_tile_rows // 128,
                            int(target_tile_bytes) // (128 * d_pad * itemsize)))
    if G <= max_groups:
        r = G                       # block equals the full dim -> always legal
    elif max_groups >= 8:
        r = (max_groups // 8) * 8   # output block sublane dim must be 8-aligned
    else:
        r = min(8, G)
        # TODO(synk): very large D (f32 D > ~8K) would also need K-tiling to
        # keep an 8-group tile inside VMEM; not needed for typical embeddings.
    num_tiles = pl.cdiv(G, r)       # partial last block handled by Pallas

    zx3 = z_x.reshape(G, 128, D)                     # contiguous, copy-free view
    w3 = w.astype(jnp.float32).reshape(1, 1, D)
    scalars = jnp.concatenate(
        [jnp.ravel(b), jnp.ravel(const)]).astype(jnp.float32)     # (2,) -> SMEM

    out = pl.pallas_call(
        _log_additive_baseline_kernel,
        out_shape=jax.ShapeDtypeStruct((G, 128), jnp.float32),
        grid=(num_tiles,),
        in_specs=[
            pl.BlockSpec((r, 128, D), lambda i: (i, 0, 0)),         # z_x tile
            pl.BlockSpec((1, 1, D), lambda i: (0, 0, 0)),           # w resident
            pl.BlockSpec(memory_space=pltpu.MemorySpace.SMEM),      # [bias, const]
        ],
        out_specs=pl.BlockSpec((r, 128), lambda i: (i, 0)),         # lane-dense
        compiler_params=pltpu.CompilerParams(
            dimension_semantics=("parallel",)),     # shard tiles across v7x's 2 TCs
        cost_estimate=pl.CostEstimate(
            flops=2 * b_pad * D,
            transcendentals=2 * b_pad,
            bytes_accessed=b_pad * D * itemsize + 4 * b_pad + 4 * D + 8),
    )(zx3, w3, scalars)

    return out.reshape(b_pad)[:B].reshape(B, 1)


def _reference(z_x, w, b, const):
    # pure-JAX reference matching the PyTorch forward
    h = z_x.astype(jnp.float32) @ w.astype(jnp.float32) + jnp.ravel(b)[0]
    c = jnp.full_like(h, jnp.ravel(const)[0])
    return jnp.logaddexp(c, h) - LOG_SCALE


if __name__ == "__main__":
    key = jax.random.PRNGKey(0)
    k_zx, k_w, k_b = jax.random.split(key, 3)

    # Small shapes: batch=200 (padded to 256 = 2 lane-groups), hidden D=32.
    B, D = 200, 32
    z_x = jax.random.normal(k_zx, (B, D), dtype=jnp.float32)
    # LearnedConditionalBaseline encoder: Linear(D, 1)
    w = jax.random.normal(k_w, (D, 1), dtype=jnp.float32) * (1.0 / math.sqrt(D))
    b = jax.random.normal(k_b, (1,), dtype=jnp.float32) * 0.1
    # ConstantBaseline: nn.Parameter(torch.zeros(1))
    const = jnp.zeros((1,), dtype=jnp.float32)

    out = jax.block_until_ready(log_additive_baseline(z_x, w, b, const))
    ref = _reference(z_x, w, b, const)
    np.testing.assert_allclose(np.asarray(out), np.asarray(ref),
                               rtol=1e-5, atol=1e-5)

    # Functional check of the multi-tile + partial-last-block path:
    # B2=1200 -> 10 lane-groups, tile = 8 groups -> grid of 2, last tile partial.
    B2 = 1200
    z_x2 = jax.random.normal(k_zx, (B2, D), dtype=jnp.float32)
    out2 = jax.block_until_ready(
        log_additive_baseline(z_x2, w, b, const, max_tile_rows=1024))
    ref2 = _reference(z_x2, w, b, const)
    np.testing.assert_allclose(np.asarray(out2), np.asarray(ref2),
                               rtol=1e-5, atol=1e-5)

    print("KERNEL_OK")
</pallas_src>

<mosaic_0001>
module attributes {stable_mosaic.version = 11 : i64} {
  func.func @_log_additive_baseline_kernel(%arg0: i32, %arg1: memref<2x128x32xf32, #tpu.memory_space<vmem>>, %arg2: memref<1x1x32xf32, #tpu.memory_space<vmem>>, %arg3: memref<2xf32, #tpu.memory_space<smem>>, %arg4: memref<2x128xf32, #tpu.memory_space<vmem>>) attributes {dimension_semantics = [#tpu.dimension_semantics<parallel>], iteration_bounds = array<i64: 1>, scalar_prefetch = 0 : i64, scratch_operands = 0 : i64, tpu.core_type = #tpu.core_type<tc>, window_params = [{transform_indices = @transform_0, window_bounds = array<i64: 2, 128, 32>}, {pipeline_mode = #tpu.pipeline_mode<synchronous>, transform_indices = @transform_1, window_bounds = array<i64: 1, 1, 32>}, {transform_indices = @transform_2, window_bounds = array<i64: 2>}, {transform_indices = @transform_3, window_bounds = array<i64: 2, 128>}]} {
    %c0 = arith.constant 0 : index
    %c0_0 = arith.constant 0 : index
    %c0_1 = arith.constant 0 : index
    %0 = vector.load %arg1[%c0, %c0_0, %c0_1] : memref<2x128x32xf32, #tpu.memory_space<vmem>>, vector<2x128x32xf32>
    %c0_2 = arith.constant 0 : index
    %c0_3 = arith.constant 0 : index
    %c0_4 = arith.constant 0 : index
    %1 = vector.load %arg2[%c0_2, %c0_3, %c0_4] : memref<1x1x32xf32, #tpu.memory_space<vmem>>, vector<1x1x32xf32>
    %c0_5 = arith.constant 0 : index
    %2 = memref.load %arg3[%c0_5] : memref<2xf32, #tpu.memory_space<smem>>
    %c1 = arith.constant 1 : index
    %3 = memref.load %arg3[%c1] : memref<2xf32, #tpu.memory_space<smem>>
    %4 = vector.broadcast %1 : vector<1x1x32xf32> to vector<2x128x32xf32>
    %5 = arith.mulf %0, %4 : vector<2x128x32xf32>
    %cst = arith.constant dense<0.000000e+00> : vector<2x128xf32>
    %6 = vector.multi_reduction <add>, %5, %cst [2] : vector<2x128x32xf32> to vector<2x128xf32>
    %7 = vector.broadcast %2 : f32 to vector<2x128xf32>
    %8 = arith.addf %6, %7 : vector<2x128xf32>
    %9 = vector.broadcast %3 : f32 to vector<2x128xf32>
    %10 = arith.maximumf %8, %9 : vector<2x128xf32>
    %11 = vector.broadcast %3 : f32 to vector<2x128xf32>
    %12 = arith.subf %8, %11 : vector<2x128xf32>
    %13 = math.absf %12 : vector<2x128xf32>
    %cst_6 = arith.constant 0.000000e+00 : f32
    %14 = vector.broadcast %cst_6 : f32 to vector<2x128xf32>
    %15 = arith.subf %14, %13 : vector<2x128xf32>
    %16 = math.exp %15 : vector<2x128xf32>
    %cst_7 = arith.constant 1.000000e+00 : f32
    %17 = vector.broadcast %cst_7 : f32 to vector<2x128xf32>
    %18 = arith.addf %17, %16 : vector<2x128xf32>
    %19 = math.log %18 : vector<2x128xf32>
    %20 = arith.addf %10, %19 : vector<2x128xf32>
    %cst_8 = arith.constant 0.693147182 : f32
    %21 = vector.broadcast %cst_8 : f32 to vector<2x128xf32>
    %22 = arith.subf %20, %21 : vector<2x128xf32>
    %c0_9 = arith.constant 0 : index
    %c0_10 = arith.constant 0 : index
    %23 = vector.load %arg4[%c0_9, %c0_10] : memref<2x128xf32, #tpu.memory_space<vmem>>, vector<2x128xf32>
    tpu.vector_store %arg4[%c0_9, %c0_10], %22 {strides = array<i32>} : memref<2x128xf32, #tpu.memory_space<vmem>>, vector<2x128xf32>,
    return
  }
  func.func @transform_0(%arg0: i32) -> (i32, i32, i32) {
    %c0_i32 = arith.constant 0 : i32
    %c0_i32_0 = arith.constant 0 : i32
    %c0_i32_1 = arith.constant 0 : i32
    return %arg0, %c0_i32, %c0_i32_0 : i32, i32, i32
  }
  func.func @transform_1(%arg0: i32) -> (i32, i32, i32) {
    %c0_i32 = arith.constant 0 : i32
    %c0_i32_0 = arith.constant 0 : i32
    %c0_i32_1 = arith.constant 0 : i32
    %c0_i32_2 = arith.constant 0 : i32
    return %c0_i32, %c0_i32_0, %c0_i32_1 : i32, i32, i32
  }
  func.func @transform_2(%arg0: i32) -> i32 {
    %c0_i32 = arith.constant 0 : i32
    %c0_i32_0 = arith.constant 0 : i32
    return %c0_i32 : i32
  }
  func.func @transform_3(%arg0: i32) -> (i32, i32) {
    %c0_i32 = arith.constant 0 : i32
    %c0_i32_0 = arith.constant 0 : i32
    return %arg0, %c0_i32 : i32, i32
  }
}

</mosaic_0001>

<llo_original>
// kernel: tpu_custom_call.1
$region0: #{tpu_custom_call.1}
  #allocation0 [shape = 'u32[]', space=smem, size = 0x4, offset = 0x4, fixed_abs, tag = 'smem constant byte address 0x4 - core index']
  #allocation1 [shape = 'u32[144,128]{1,0:T(1,128)}', space=vmem, size = 0x12000, scoped, tag = 'internal scratch']
  %s0 = inlined_call_operand.vmem [shape: f32[2,128,32], index: 0, kind: input, shape index: {}]
  %s1 = inlined_call_operand.vmem [shape: f32[1,1,32], index: 1, kind: input, shape index: {}]
  %s2 = inlined_call_operand.vmem [shape: f32[2], index: 2, kind: input, shape index: {}]
  %s3 = inlined_call_operand.hbm [shape: f32[2,128], index: 3, kind: output, shape index: {}]
  %s4 = sld [smem:[#allocation0]]
  $region26: #{tpu_custom_call.1} parent=0
    _
  %s6 = ssub.s32 1, %s4
  %s7 = scalar_select 0, %s6, %s4
  $region1: #{tpu_custom_call.1} parent=0
    #allocation2 [shape = 'u8[512]{0}', space=smem, size = 0x200, scoped, tag = 'input window, operand 2, single buffered']
    #allocation3 [shape = 's32[1]{0}', space=sflag, size = 0x4, scoped, tag = 'scoped memory for tpu_custom_call.1']
    #allocation4 [shape = 's32[1]{0}', space=sflag, size = 0x4, scoped, tag = 'scoped memory for tpu_custom_call.1']
    #allocation5 [shape = 'u8[1024]{0}', space=vmem, size = 0x400, scoped, tag = 'output window, operand 0, single buffered']
    %8 = vsyncpa [#allocation4], 0
    %9 = vsyncpa [#allocation3], 0
    // Predicated region
    $region2: #{tpu_custom_call.1} parent=1 // pred_check
      _
    $region3: #{tpu_custom_call.1} parent=1 // pred_check_branch
      %11 = sbr.rel (0) target = $region5
    $region4: #{tpu_custom_call.1} parent=1 // pred_region
      _
    $region5: #{tpu_custom_call.1} parent=1 // pred_fallthru
      _
    // Predicated region
    $region6: #{tpu_custom_call.1} parent=1 // pred_check
      _
    $region7: #{tpu_custom_call.1} parent=1 // pred_check_branch
      %13 = sbr.rel (0) target = $region9
    $region8: #{tpu_custom_call.1} parent=1 // pred_region
      _
    $region9: #{tpu_custom_call.1} parent=1 // pred_fallthru
      _
    // Predicated region
    $region10: #{tpu_custom_call.1} parent=1 // pred_check
      _
    $region11: #{tpu_custom_call.1} parent=1 // pred_check_branch
      %15 = sbr.rel (0) target = $region13
    $region12: #{tpu_custom_call.1} parent=1 // pred_region
      %s17 = ssub.s32 16, 16
      %18 = vsyncadd [#allocation4], %s17
      %s20 = sshll.u32 %s2, 4
      %s21 = int_to_ptr.vmem [resolvable:$true] %s20
      %23 = dma.vmem_to_smem %s21, 16, [#allocation2], [#allocation4]
    $region13: #{tpu_custom_call.1} parent=1 // pred_fallthru
      _
    // Predicated region
    $region14: #{tpu_custom_call.1} parent=1 // pred_check
      _
    $region15: #{tpu_custom_call.1} parent=1 // pred_check_branch
      %25 = sbr.rel (0) target = $region17
    $region16: #{tpu_custom_call.1} parent=1 // pred_region
      %26 = dma.done [#allocation4], 16
    $region17: #{tpu_custom_call.1} parent=1 // pred_fallthru
      _
    %27 = sfence
    %v28 = vld [vmem:[%s0] sm:$0xff]
    %v29 = vld [vmem:[%s0 + $0x8] sm:$0xff]
    %v30 = vld [vmem:[%s0 + $0x10] sm:$0xff]
    %v31 = vld [vmem:[%s0 + $0x18] sm:$0xff]
    %v32 = vld [vmem:[%s0 + $0x20] sm:$0xff]
    %v33 = vld [vmem:[%s0 + $0x28] sm:$0xff]
    %v34 = vld [vmem:[%s0 + $0x30] sm:$0xff]
    %v35 = vld [vmem:[%s0 + $0x38] sm:$0xff]
    %v36 = vld [vmem:[%s0 + $0x40] sm:$0xff]
    %v37 = vld [vmem:[%s0 + $0x48] sm:$0xff]
    %v38 = vld [vmem:[%s0 + $0x50] sm:$0xff]
    %v39 = vld [vmem:[%s0 + $0x58] sm:$0xff]
    %v40 = vld [vmem:[%s0 + $0x60] sm:$0xff]
    %v41 = vld [vmem:[%s0 + $0x68] sm:$0xff]
    %v42 = vld [vmem:[%s0 + $0x70] sm:$0xff]
    %v43 = vld [vmem:[%s0 + $0x78] sm:$0xff]
    %v44 = vld [vmem:[%s0 + $0x80] sm:$0xff]
    %v45 = vld [vmem:[%s0 + $0x88] sm:$0xff]
    %v46 = vld [vmem:[%s0 + $0x90] sm:$0xff]
    %v47 = vld [vmem:[%s0 + $0x98] sm:$0xff]
    %v48 = vld [vmem:[%s0 + $0xa0] sm:$0xff]
    %v49 = vld [vmem:[%s0 + $0xa8] sm:$0xff]
    %v50 = vld [vmem:[%s0 + $0xb0] sm:$0xff]
    %v51 = vld [vmem:[%s0 + $0xb8] sm:$0xff]
    %v52 = vld [vmem:[%s0 + $0xc0] sm:$0xff]
    %v53 = vld [vmem:[%s0 + $0xc8] sm:$0xff]
    %v54 = vld [vmem:[%s0 + $0xd0] sm:$0xff]
    %v55 = vld [vmem:[%s0 + $0xd8] sm:$0xff]
    %v56 = vld [vmem:[%s0 + $0xe0] sm:$0xff]
    %v57 = vld [vmem:[%s0 + $0xe8] sm:$0xff]
    %v58 = vld [vmem:[%s0 + $0xf0] sm:$0xff]
    %v59 = vld [vmem:[%s0 + $0xf8] sm:$0xff]
    %v60 = vld [vmem:[%s1] sm:$0x1]
    %s61 = sld [smem:[#allocation2]]
    %s62 = sld [smem:[#allocation2 + $0x1]]
    %v64 = vlaneseq
    %v65 = vshrl.u32 %v64, 7
    %v66 = vsub.s32 0, %v65
    %v67 = vrot.slane %v60, %v66
    %v69 = vmul.f32 %v28, %v67
    %v70 = vmul.f32 %v29, %v67
    %v71 = vmul.f32 %v30, %v67
    %v72 = vmul.f32 %v31, %v67
    %v73 = vmul.f32 %v32, %v67
    %v74 = vmul.f32 %v33, %v67
    %v75 = vmul.f32 %v34, %v67
    %v76 = vmul.f32 %v35, %v67
    %v77 = vmul.f32 %v36, %v67
    %v78 = vmul.f32 %v37, %v67
    %v79 = vmul.f32 %v38, %v67
    %v80 = vmul.f32 %v39, %v67
    %v81 = vmul.f32 %v40, %v67
    %v82 = vmul.f32 %v41, %v67
    %v83 = vmul.f32 %v42, %v67
    %v84 = vmul.f32 %v43, %v67
    %v85 = vmul.f32 %v44, %v67
    %v86 = vmul.f32 %v45, %v67
    %v87 = vmul.f32 %v46, %v67
    %v88 = vmul.f32 %v47, %v67
    %v89 = vmul.f32 %v48, %v67
    %v90 = vmul.f32 %v49, %v67
    %v91 = vmul.f32 %v50, %v67
    %v92 = vmul.f32 %v51, %v67
    %v93 = vmul.f32 %v52, %v67
    %v94 = vmul.f32 %v53, %v67
    %v95 = vmul.f32 %v54, %v67
    %v96 = vmul.f32 %v55, %v67
    %v97 = vmul.f32 %v56, %v67
    %v98 = vmul.f32 %v57, %v67
    %v99 = vmul.f32 %v58, %v67
    %v100 = vmul.f32 %v59, %v67
    %vm101 = vcmask 261120
    %v102 = vsel %vm101, %v69, 0.0
    %103 = vadd.xlane.f32.xlu0 %v102
    %v104 = vpop.xlane.xlu0 %103
    %v105 = vsel %vm101, %v70, 0.0
    %106 = vadd.xlane.f32.xlu0 %v105
    %v107 = vpop.xlane.xlu0 %106
    %v108 = vsel %vm101, %v71, 0.0
    %109 = vadd.xlane.f32.xlu0 %v108
    %v110 = vpop.xlane.xlu0 %109
    %v111 = vsel %vm101, %v72, 0.0
    %112 = vadd.xlane.f32.xlu0 %v111
    %v113 = vpop.xlane.xlu0 %112
    %v114 = vsel %vm101, %v73, 0.0
    %115 = vadd.xlane.f32.xlu0 %v114
    %v116 = vpop.xlane.xlu0 %115
    %v117 = vsel %vm101, %v74, 0.0
    %118 = vadd.xlane.f32.xlu0 %v117
    %v119 = vpop.xlane.xlu0 %118
    %v120 = vsel %vm101, %v75, 0.0
    %121 = vadd.xlane.f32.xlu0 %v120
    %v122 = vpop.xlane.xlu0 %121
    %v123 = vsel %vm101, %v76, 0.0
    %124 = vadd.xlane.f32.xlu0 %v123
    %v125 = vpop.xlane.xlu0 %124
    %v126 = vsel %vm101, %v77, 0.0
    %127 = vadd.xlane.f32.xlu0 %v126
    %v128 = vpop.xlane.xlu0 %127
    %v129 = vsel %vm101, %v78, 0.0
    %130 = vadd.xlane.f32.xlu0 %v129
    %v131 = vpop.xlane.xlu0 %130
    %v132 = vsel %vm101, %v79, 0.0
    %133 = vadd.xlane.f32.xlu0 %v132
    %v134 = vpop.xlane.xlu0 %133
    %v135 = vsel %vm101, %v80, 0.0
    %136 = vadd.xlane.f32.xlu0 %v135
    %v137 = vpop.xlane.xlu0 %136
    %v138 = vsel %vm101, %v81, 0.0
    %139 = vadd.xlane.f32.xlu0 %v138
    %v140 = vpop.xlane.xlu0 %139
    %v141 = vsel %vm101, %v82, 0.0
    %142 = vadd.xlane.f32.xlu0 %v141
    %v143 = vpop.xlane.xlu0 %142
    %v144 = vsel %vm101, %v83, 0.0
    %145 = vadd.xlane.f32.xlu0 %v144
    %v146 = vpop.xlane.xlu0 %145
    %v147 = vsel %vm101, %v84, 0.0
    %148 = vadd.xlane.f32.xlu0 %v147
    %v149 = vpop.xlane.xlu0 %148
    %v150 = vsel %vm101, %v85, 0.0
    %151 = vadd.xlane.f32.xlu0 %v150
    %v152 = vpop.xlane.xlu0 %151
    %v153 = vsel %vm101, %v86, 0.0
    %154 = vadd.xlane.f32.xlu0 %v153
    %v155 = vpop.xlane.xlu0 %154
    %v156 = vsel %vm101, %v87, 0.0
    %157 = vadd.xlane.f32.xlu0 %v156
    %v158 = vpop.xlane.xlu0 %157
    %v159 = vsel %vm101, %v88, 0.0
    %160 = vadd.xlane.f32.xlu0 %v159
    %v161 = vpop.xlane.xlu0 %160
    %v162 = vsel %vm101, %v89, 0.0
    %163 = vadd.xlane.f32.xlu0 %v162
    %v164 = vpop.xlane.xlu0 %163
    %v165 = vsel %vm101, %v90, 0.0
    %166 = vadd.xlane.f32.xlu0 %v165
    %v167 = vpop.xlane.xlu0 %166
    %v168 = vsel %vm101, %v91, 0.0
    %169 = vadd.xlane.f32.xlu0 %v168
    %v170 = vpop.xlane.xlu0 %169
    %v171 = vsel %vm101, %v92, 0.0
    %172 = vadd.xlane.f32.xlu0 %v171
    %v173 = vpop.xlane.xlu0 %172
    %v174 = vsel %vm101, %v93, 0.0
    %175 = vadd.xlane.f32.xlu0 %v174
    %v176 = vpop.xlane.xlu0 %175
    %v177 = vsel %vm101, %v94, 0.0
    %178 = vadd.xlane.f32.xlu0 %v177
    %v179 = vpop.xlane.xlu0 %178
    %v180 = vsel %vm101, %v95, 0.0
    %181 = vadd.xlane.f32.xlu0 %v180
    %v182 = vpop.xlane.xlu0 %181
    %v183 = vsel %vm101, %v96, 0.0
    %184 = vadd.xlane.f32.xlu0 %v183
    %v185 = vpop.xlane.xlu0 %184
    %v186 = vsel %vm101, %v97, 0.0
    %187 = vadd.xlane.f32.xlu0 %v186
    %v188 = vpop.xlane.xlu0 %187
    %v189 = vsel %vm101, %v98, 0.0
    %190 = vadd.xlane.f32.xlu0 %v189
    %v191 = vpop.xlane.xlu0 %190
    %v192 = vsel %vm101, %v99, 0.0
    %193 = vadd.xlane.f32.xlu0 %v192
    %v194 = vpop.xlane.xlu0 %193
    %v195 = vsel %vm101, %v100, 0.0
    %196 = vadd.xlane.f32.xlu0 %v195
    %v197 = vpop.xlane.xlu0 %196
    %v198 = vstv %s61
    %v199 = vadd.f32 %v104, %v198
    %v200 = vadd.f32 %v107, %v198
    %v201 = vadd.f32 %v110, %v198
    %v202 = vadd.f32 %v113, %v198
    %v203 = vadd.f32 %v116, %v198
    %v204 = vadd.f32 %v119, %v198
    %v205 = vadd.f32 %v122, %v198
    %v206 = vadd.f32 %v125, %v198
    %v207 = vadd.f32 %v128, %v198
    %v208 = vadd.f32 %v131, %v198
    %v209 = vadd.f32 %v134, %v198
    %v210 = vadd.f32 %v137, %v198
    %v211 = vadd.f32 %v140, %v198
    %v212 = vadd.f32 %v143, %v198
    %v213 = vadd.f32 %v146, %v198
    %v214 = vadd.f32 %v149, %v198
    %v215 = vadd.f32 %v152, %v198
    %v216 = vadd.f32 %v155, %v198
    %v217 = vadd.f32 %v158, %v198
    %v218 = vadd.f32 %v161, %v198
    %v219 = vadd.f32 %v164, %v198
    %v220 = vadd.f32 %v167, %v198
    %v221 = vadd.f32 %v170, %v198
    %v222 = vadd.f32 %v173, %v198
    %v223 = vadd.f32 %v176, %v198
    %v224 = vadd.f32 %v179, %v198
    %v225 = vadd.f32 %v182, %v198
    %v226 = vadd.f32 %v185, %v198
    %v227 = vadd.f32 %v188, %v198
    %v228 = vadd.f32 %v191, %v198
    %v229 = vadd.f32 %v194, %v198
    %v230 = vadd.f32 %v197, %v198
    %v231 = vstv %s62
    %v232 = vmax.f32 %v199, %v231
    %v233 = vmax.f32 %v200, %v231
    %v234 = vmax.f32 %v201, %v231
    %v235 = vmax.f32 %v202, %v231
    %v236 = vmax.f32 %v203, %v231
    %v237 = vmax.f32 %v204, %v231
    %v238 = vmax.f32 %v205, %v231
    %v239 = vmax.f32 %v206, %v231
    %v240 = vmax.f32 %v207, %v231
    %v241 = vmax.f32 %v208, %v231
    %v242 = vmax.f32 %v209, %v231
    %v243 = vmax.f32 %v210, %v231
    %v244 = vmax.f32 %v211, %v231
    %v245 = vmax.f32 %v212, %v231
    %v246 = vmax.f32 %v213, %v231
    %v247 = vmax.f32 %v214, %v231
    %v248 = vmax.f32 %v215, %v231
    %v249 = vmax.f32 %v216, %v231
    %v250 = vmax.f32 %v217, %v231
    %v251 = vmax.f32 %v218, %v231
    %v252 = vmax.f32 %v219, %v231
    %v253 = vmax.f32 %v220, %v231
    %v254 = vmax.f32 %v221, %v231
    %v255 = vmax.f32 %v222, %v231
    %v256 = vmax.f32 %v223, %v231
    %v257 = vmax.f32 %v224, %v231
    %v258 = vmax.f32 %v225, %v231
    %v259 = vmax.f32 %v226, %v231
    %v260 = vmax.f32 %v227, %v231
    %v261 = vmax.f32 %v228, %v231
    %v262 = vmax.f32 %v229, %v231
    %v263 = vmax.f32 %v230, %v231
    %v264 = vsub.f32 %v199, %v231
    %v265 = vsub.f32 %v200, %v231
    %v266 = vsub.f32 %v201, %v231
    %v267 = vsub.f32 %v202, %v231
    %v268 = vsub.f32 %v203, %v231
    %v269 = vsub.f32 %v204, %v231
    %v270 = vsub.f32 %v205, %v231
    %v271 = vsub.f32 %v206, %v231
    %v272 = vsub.f32 %v207, %v231
    %v273 = vsub.f32 %v208, %v231
    %v274 = vsub.f32 %v209, %v231
    %v275 = vsub.f32 %v210, %v231
    %v276 = vsub.f32 %v211, %v231
    %v277 = vsub.f32 %v212, %v231
    %v278 = vsub.f32 %v213, %v231
    %v279 = vsub.f32 %v214, %v231
    %v280 = vsub.f32 %v215, %v231
    %v281 = vsub.f32 %v216, %v231
    %v282 = vsub.f32 %v217, %v231
    %v283 = vsub.f32 %v218, %v231
    %v284 = vsub.f32 %v219, %v231
    %v285 = vsub.f32 %v220, %v231
    %v286 = vsub.f32 %v221, %v231
    %v287 = vsub.f32 %v222, %v231
    %v288 = vsub.f32 %v223, %v231
    %v289 = vsub.f32 %v224, %v231
    %v290 = vsub.f32 %v225, %v231
    %v291 = vsub.f32 %v226, %v231
    %v292 = vsub.f32 %v227, %v231
    %v293 = vsub.f32 %v228, %v231
    %v294 = vsub.f32 %v229, %v231
    %v295 = vsub.f32 %v230, %v231
    %v296 = vand.u32 2147483647, %v264
    %v297 = vand.u32 2147483647, %v265
    %v298 = vand.u32 2147483647, %v266
    %v299 = vand.u32 2147483647, %v267
    %v300 = vand.u32 2147483647, %v268
    %v301 = vand.u32 2147483647, %v269
    %v302 = vand.u32 2147483647, %v270
    %v303 = vand.u32 2147483647, %v271
    %v304 = vand.u32 2147483647, %v272
    %v305 = vand.u32 2147483647, %v273
    %v306 = vand.u32 2147483647, %v274
    %v307 = vand.u32 2147483647, %v275
    %v308 = vand.u32 2147483647, %v276
    %v309 = vand.u32 2147483647, %v277
    %v310 = vand.u32 2147483647, %v278
    %v311 = vand.u32 2147483647, %v279
    %v312 = vand.u32 2147483647, %v280
    %v313 = vand.u32 2147483647, %v281
    %v314 = vand.u32 2147483647, %v282
    %v315 = vand.u32 2147483647, %v283
    %v316 = vand.u32 2147483647, %v284
    %v317 = vand.u32 2147483647, %v285
    %v318 = vand.u32 2147483647, %v286
    %v319 = vand.u32 2147483647, %v287
    %v320 = vand.u32 2147483647, %v288
    %v321 = vand.u32 2147483647, %v289
    %v322 = vand.u32 2147483647, %v290
    %v323 = vand.u32 2147483647, %v291
    %v324 = vand.u32 2147483647, %v292
    %v325 = vand.u32 2147483647, %v293
    %v326 = vand.u32 2147483647, %v294
    %v327 = vand.u32 2147483647, %v295
    %v328 = vsub.f32 0.0, %v296
    %v329 = vsub.f32 0.0, %v297
    %v330 = vsub.f32 0.0, %v298
    %v331 = vsub.f32 0.0, %v299
    %v332 = vsub.f32 0.0, %v300
    %v333 = vsub.f32 0.0, %v301
    %v334 = vsub.f32 0.0, %v302
    %v335 = vsub.f32 0.0, %v303
    %v336 = vsub.f32 0.0, %v304
    %v337 = vsub.f32 0.0, %v305
    %v338 = vsub.f32 0.0, %v306
    %v339 = vsub.f32 0.0, %v307
    %v340 = vsub.f32 0.0, %v308
    %v341 = vsub.f32 0.0, %v309
    %v342 = vsub.f32 0.0, %v310
    %v343 = vsub.f32 0.0, %v311
    %v344 = vsub.f32 0.0, %v312
    %v345 = vsub.f32 0.0, %v313
    %v346 = vsub.f32 0.0, %v314
    %v347 = vsub.f32 0.0, %v315
    %v348 = vsub.f32 0.0, %v316
    %v349 = vsub.f32 0.0, %v317
    %v350 = vsub.f32 0.0, %v318
    %v351 = vsub.f32 0.0, %v319
    %v352 = vsub.f32 0.0, %v320
    %v353 = vsub.f32 0.0, %v321
    %v354 = vsub.f32 0.0, %v322
    %v355 = vsub.f32 0.0, %v323
    %v356 = vsub.f32 0.0, %v324
    %v357 = vsub.f32 0.0, %v325
    %v358 = vsub.f32 0.0, %v326
    %v359 = vsub.f32 0.0, %v327
    %v360 = vmul.f32 %v328, 1.442695
    %v361 = vpow.pop %v360
    %v362 = vmul.f32 %v329, 1.442695
    %v363 = vpow.pop %v362
    %v364 = vmul.f32 %v330, 1.442695
    %v365 = vpow.pop %v364
    %v366 = vmul.f32 %v331, 1.442695
    %v367 = vpow.pop %v366
    %v368 = vmul.f32 %v332, 1.442695
    %v369 = vpow.pop %v368
    %v370 = vmul.f32 %v333, 1.442695
    %v371 = vpow.pop %v370
    %v372 = vmul.f32 %v334, 1.442695
    %v373 = vpow.pop %v372
    %v374 = vmul.f32 %v335, 1.442695
    %v375 = vpow.pop %v374
    %v376 = vmul.f32 %v336, 1.442695
    %v377 = vpow.pop %v376
    %v378 = vmul.f32 %v337, 1.442695
    %v379 = vpow.pop %v378
    %v380 = vmul.f32 %v338, 1.442695
    %v381 = vpow.pop %v380
    %v382 = vmul.f32 %v339, 1.442695
    %v383 = vpow.pop %v382
    %v384 = vmul.f32 %v340, 1.442695
    %v385 = vpow.pop %v384
    %v386 = vmul.f32 %v341, 1.442695
    %v387 = vpow.pop %v386
    %v388 = vmul.f32 %v342, 1.442695
    %v389 = vpow.pop %v388
    %v390 = vmul.f32 %v343, 1.442695
    %v391 = vpow.pop %v390
    %v392 = vmul.f32 %v344, 1.442695
    %v393 = vpow.pop %v392
    %v394 = vmul.f32 %v345, 1.442695
    %v395 = vpow.pop %v394
    %v396 = vmul.f32 %v346, 1.442695
    %v397 = vpow.pop %v396
    %v398 = vmul.f32 %v347, 1.442695
    %v399 = vpow.pop %v398
    %v400 = vmul.f32 %v348, 1.442695
    %v401 = vpow.pop %v400
    %v402 = vmul.f32 %v349, 1.442695
    %v403 = vpow.pop %v402
    %v404 = vmul.f32 %v350, 1.442695
    %v405 = vpow.pop %v404
    %v406 = vmul.f32 %v351, 1.442695
    %v407 = vpow.pop %v406
    %v408 = vmul.f32 %v352, 1.442695
    %v409 = vpow.pop %v408
    %v410 = vmul.f32 %v353, 1.442695
    %v411 = vpow.pop %v410
    %v412 = vmul.f32 %v354, 1.442695
    %v413 = vpow.pop %v412
    %v414 = vmul.f32 %v355, 1.442695
    %v415 = vpow.pop %v414
    %v416 = vmul.f32 %v356, 1.442695
    %v417 = vpow.pop %v416
    %v418 = vmul.f32 %v357, 1.442695
    %v419 = vpow.pop %v418
    %v420 = vmul.f32 %v358, 1.442695
    %v421 = vpow.pop %v420
    %v422 = vmul.f32 %v359, 1.442695
    %v423 = vpow.pop %v422
    %v424 = vadd.f32 %v361, 1.0
    %v425 = vadd.f32 %v363, 1.0
    %v426 = vadd.f32 %v365, 1.0
    %v427 = vadd.f32 %v367, 1.0
    %v428 = vadd.f32 %v369, 1.0
    %v429 = vadd.f32 %v371, 1.0
    %v430 = vadd.f32 %v373, 1.0
    %v431 = vadd.f32 %v375, 1.0
    %v432 = vadd.f32 %v377, 1.0
    %v433 = vadd.f32 %v379, 1.0
    %v434 = vadd.f32 %v381, 1.0
    %v435 = vadd.f32 %v383, 1.0
    %v436 = vadd.f32 %v385, 1.0
    %v437 = vadd.f32 %v387, 1.0
    %v438 = vadd.f32 %v389, 1.0
    %v439 = vadd.f32 %v391, 1.0
    %v440 = vadd.f32 %v393, 1.0
    %v441 = vadd.f32 %v395, 1.0
    %v442 = vadd.f32 %v397, 1.0
    %v443 = vadd.f32 %v399, 1.0
    %v444 = vadd.f32 %v401, 1.0
    %v445 = vadd.f32 %v403, 1.0
    %v446 = vadd.f32 %v405, 1.0
    %v447 = vadd.f32 %v407, 1.0
    %v448 = vadd.f32 %v409, 1.0
    %v449 = vadd.f32 %v411, 1.0
    %v450 = vadd.f32 %v413, 1.0
    %v451 = vadd.f32 %v415, 1.0
    %v452 = vadd.f32 %v417, 1.0
    %v453 = vadd.f32 %v419, 1.0
    %v454 = vadd.f32 %v421, 1.0
    %v455 = vadd.f32 %v423, 1.0
    %v456 = vlog2.pop %v424
    %v457 = vmul.f32 %v456, 0.6931472
    %v458 = vlog2.pop %v425
    %v459 = vmul.f32 %v458, 0.6931472
    %v460 = vlog2.pop %v426
    %v461 = vmul.f32 %v460, 0.6931472
    %v462 = vlog2.pop %v427
    %v463 = vmul.f32 %v462, 0.6931472
    %v464 = vlog2.pop %v428
    %v465 = vmul.f32 %v464, 0.6931472
    %v466 = vlog2.pop %v429
    %v467 = vmul.f32 %v466, 0.6931472
    %v468 = vlog2.pop %v430
    %v469 = vmul.f32 %v468, 0.6931472
    %v470 = vlog2.pop %v431
    %v471 = vmul.f32 %v470, 0.6931472
    %v472 = vlog2.pop %v432
    %v473 = vmul.f32 %v472, 0.6931472
    %v474 = vlog2.pop %v433
    %v475 = vmul.f32 %v474, 0.6931472
    %v476 = vlog2.pop %v434
    %v477 = vmul.f32 %v476, 0.6931472
    %v478 = vlog2.pop %v435
    %v479 = vmul.f32 %v478, 0.6931472
    %v480 = vlog2.pop %v436
    %v481 = vmul.f32 %v480, 0.6931472
    %v482 = vlog2.pop %v437
    %v483 = vmul.f32 %v482, 0.6931472
    %v484 = vlog2.pop %v438
    %v485 = vmul.f32 %v484, 0.6931472
    %v486 = vlog2.pop %v439
    %v487 = vmul.f32 %v486, 0.6931472
    %v488 = vlog2.pop %v440
    %v489 = vmul.f32 %v488, 0.6931472
    %v490 = vlog2.pop %v441
    %v491 = vmul.f32 %v490, 0.6931472
    %v492 = vlog2.pop %v442
    %v493 = vmul.f32 %v492, 0.6931472
    %v494 = vlog2.pop %v443
    %v495 = vmul.f32 %v494, 0.6931472
    %v496 = vlog2.pop %v444
    %v497 = vmul.f32 %v496, 0.6931472
    %v498 = vlog2.pop %v445
    %v499 = vmul.f32 %v498, 0.6931472
    %v500 = vlog2.pop %v446
    %v501 = vmul.f32 %v500, 0.6931472
    %v502 = vlog2.pop %v447
    %v503 = vmul.f32 %v502, 0.6931472
    %v504 = vlog2.pop %v448
    %v505 = vmul.f32 %v504, 0.6931472
    %v506 = vlog2.pop %v449
    %v507 = vmul.f32 %v506, 0.6931472
    %v508 = vlog2.pop %v450
    %v509 = vmul.f32 %v508, 0.6931472
    %v510 = vlog2.pop %v451
    %v511 = vmul.f32 %v510, 0.6931472
    %v512 = vlog2.pop %v452
    %v513 = vmul.f32 %v512, 0.6931472
    %v514 = vlog2.pop %v453
    %v515 = vmul.f32 %v514, 0.6931472
    %v516 = vlog2.pop %v454
    %v517 = vmul.f32 %v516, 0.6931472
    %v518 = vlog2.pop %v455
    %v519 = vmul.f32 %v518, 0.6931472
    %v520 = vadd.f32 %v232, %v457
    %v521 = vadd.f32 %v233, %v459
    %v522 = vadd.f32 %v234, %v461
    %v523 = vadd.f32 %v235, %v463
    %v524 = vadd.f32 %v236, %v465
    %v525 = vadd.f32 %v237, %v467
    %v526 = vadd.f32 %v238, %v469
    %v527 = vadd.f32 %v239, %v471
    %v528 = vadd.f32 %v240, %v473
    %v529 = vadd.f32 %v241, %v475
    %v530 = vadd.f32 %v242, %v477
    %v531 = vadd.f32 %v243, %v479
    %v532 = vadd.f32 %v244, %v481
    %v533 = vadd.f32 %v245, %v483
    %v534 = vadd.f32 %v246, %v485
    %v535 = vadd.f32 %v247, %v487
    %v536 = vadd.f32 %v248, %v489
    %v537 = vadd.f32 %v249, %v491
    %v538 = vadd.f32 %v250, %v493
    %v539 = vadd.f32 %v251, %v495
    %v540 = vadd.f32 %v252, %v497
    %v541 = vadd.f32 %v253, %v499
    %v542 = vadd.f32 %v254, %v501
    %v543 = vadd.f32 %v255, %v503
    %v544 = vadd.f32 %v256, %v505
    %v545 = vadd.f32 %v257, %v507
    %v546 = vadd.f32 %v258, %v509
    %v547 = vadd.f32 %v259, %v511
    %v548 = vadd.f32 %v260, %v513
    %v549 = vadd.f32 %v261, %v515
    %v550 = vadd.f32 %v262, %v517
    %v551 = vadd.f32 %v263, %v519
    %v552 = vsub.f32 %v520, 0.6931472
    %v553 = vsub.f32 %v521, 0.6931472
    %v554 = vsub.f32 %v522, 0.6931472
    %v555 = vsub.f32 %v523, 0.6931472
    %v556 = vsub.f32 %v524, 0.6931472
    %v557 = vsub.f32 %v525, 0.6931472
    %v558 = vsub.f32 %v526, 0.6931472
    %v559 = vsub.f32 %v527, 0.6931472
    %v560 = vsub.f32 %v528, 0.6931472
    %v561 = vsub.f32 %v529, 0.6931472
    %v562 = vsub.f32 %v530, 0.6931472
    %v563 = vsub.f32 %v531, 0.6931472
    %v564 = vsub.f32 %v532, 0.6931472
    %v565 = vsub.f32 %v533, 0.6931472
    %v566 = vsub.f32 %v534, 0.6931472
    %v567 = vsub.f32 %v535, 0.6931472
    %v568 = vsub.f32 %v536, 0.6931472
    %v569 = vsub.f32 %v537, 0.6931472
    %v570 = vsub.f32 %v538, 0.6931472
    %v571 = vsub.f32 %v539, 0.6931472
    %v572 = vsub.f32 %v540, 0.6931472
    %v573 = vsub.f32 %v541, 0.6931472
    %v574 = vsub.f32 %v542, 0.6931472
    %v575 = vsub.f32 %v543, 0.6931472
    %v576 = vsub.f32 %v544, 0.6931472
    %v577 = vsub.f32 %v545, 0.6931472
    %v578 = vsub.f32 %v546, 0.6931472
    %v579 = vsub.f32 %v547, 0.6931472
    %v580 = vsub.f32 %v548, 0.6931472
    %v581 = vsub.f32 %v549, 0.6931472
    %v582 = vsub.f32 %v550, 0.6931472
    %v583 = vsub.f32 %v551, 0.6931472
    %v616 = vlaneseq
    %v617 = vand.u32 %v616, 127
    %v618 = vlaneseq
    %v619 = vshrl.u32 %v618, 7
    %v620 = vsub.s32 %v617, %v619
    %v621 = vrot.slane %v552, %v620
    %v622 = vadd.s32 %v617, 4294967288
    %v623 = vlaneseq
    %v624 = vshrl.u32 %v623, 7
    %v625 = vsub.s32 %v622, %v624
    %v626 = vrot.slane %v553, %v625
    %vm627 = vcmask 130112
    %v628 = vsel %vm627, %v626, %v621
    %v629 = vadd.s32 %v617, 4294967280
    %v630 = vlaneseq
    %v631 = vshrl.u32 %v630, 7
    %v632 = vsub.s32 %v629, %v631
    %v633 = vrot.slane %v554, %v632
    %vm634 = vcmask 195712
    %v635 = vsel %vm634, %v633, %v628
    %v636 = vadd.s32 %v617, 4294967272
    %v637 = vlaneseq
    %v638 = vshrl.u32 %v637, 7
    %v639 = vsub.s32 %v636, %v638
    %v640 = vrot.slane %v555, %v639
    %vm641 = vcmask 261312
    %v642 = vsel %vm641, %v640, %v635
    %v643 = vadd.s32 %v617, 4294967264
    %v644 = vlaneseq
    %v645 = vshrl.u32 %v644, 7
    %v646 = vsub.s32 %v643, %v645
    %v647 = vrot.slane %v556, %v646
    %vm648 = vcmask 326912
    %v649 = vsel %vm648, %v647, %v642
    %v650 = vadd.s32 %v617, 4294967256
    %v651 = vlaneseq
    %v652 = vshrl.u32 %v651, 7
    %v653 = vsub.s32 %v650, %v652
    %v654 = vrot.slane %v557, %v653
    %vm655 = vcmask 392512
    %v656 = vsel %vm655, %v654, %v649
    %v657 = vadd.s32 %v617, 4294967248
    %v658 = vlaneseq
    %v659 = vshrl.u32 %v658, 7
    %v660 = vsub.s32 %v657, %v659
    %v661 = vrot.slane %v558, %v660
    %vm662 = vcmask 458112
    %v663 = vsel %vm662, %v661, %v656
    %v664 = vadd.s32 %v617, 4294967240
    %v665 = vlaneseq
    %v666 = vshrl.u32 %v665, 7
    %v667 = vsub.s32 %v664, %v666
    %v668 = vrot.slane %v559, %v667
    %vm669 = vcmask 523712
    %v670 = vsel %vm669, %v668, %v663
    %v671 = vadd.s32 %v617, 4294967232
    %v672 = vlaneseq
    %v673 = vshrl.u32 %v672, 7
    %v674 = vsub.s32 %v671, %v673
    %v675 = vrot.slane %v560, %v674
    %vm676 = vcmask 589312
    %v677 = vsel %vm676, %v675, %v670
    %v678 = vadd.s32 %v617, 4294967224
    %v679 = vlaneseq
    %v680 = vshrl.u32 %v679, 7
    %v681 = vsub.s32 %v678, %v680
    %v682 = vrot.slane %v561, %v681
    %vm683 = vcmask 654912
    %v684 = vsel %vm683, %v682, %v677
    %v685 = vadd.s32 %v617, 4294967216
    %v686 = vlaneseq
    %v687 = vshrl.u32 %v686, 7
    %v688 = vsub.s32 %v685, %v687
    %v689 = vrot.slane %v562, %v688
    %vm690 = vcmask 720512
    %v691 = vsel %vm690, %v689, %v684
    %v692 = vadd.s32 %v617, 4294967208
    %v693 = vlaneseq
    %v694 = vshrl.u32 %v693, 7
    %v695 = vsub.s32 %v692, %v694
    %v696 = vrot.slane %v563, %v695
    %vm697 = vcmask 786112
    %v698 = vsel %vm697, %v696, %v691
    %v699 = vadd.s32 %v617, 4294967200
    %v700 = vlaneseq
    %v701 = vshrl.u32 %v700, 7
    %v702 = vsub.s32 %v699, %v701
    %v703 = vrot.slane %v564, %v702
    %vm704 = vcmask 851712
    %v705 = vsel %vm704, %v703, %v698
    %v706 = vadd.s32 %v617, 4294967192
    %v707 = vlaneseq
    %v708 = vshrl.u32 %v707, 7
    %v709 = vsub.s32 %v706, %v708
    %v710 = vrot.slane %v565, %v709
    %vm711 = vcmask 917312
    %v712 = vsel %vm711, %v710, %v705
    %v713 = vadd.s32 %v617, 4294967184
    %v714 = vlaneseq
    %v715 = vshrl.u32 %v714, 7
    %v716 = vsub.s32 %v713, %v715
    %v717 = vrot.slane %v566, %v716
    %vm718 = vcmask 982912
    %v719 = vsel %vm718, %v717, %v712
    %v720 = vadd.s32 %v617, 4294967176
    %v721 = vlaneseq
    %v722 = vshrl.u32 %v721, 7
    %v723 = vsub.s32 %v720, %v722
    %v724 = vrot.slane %v567, %v723
    %vm725 = vcmask 1048512
    %v726 = vsel %vm725, %v724, %v719
    %v727 = vlaneseq
    %v728 = vshrl.u32 %v727, 7
    %v729 = vsub.s32 %v617, %v728
    %v730 = vrot.slane %v568, %v729
    %v731 = vlaneseq
    %v732 = vshrl.u32 %v731, 7
    %v733 = vsub.s32 %v622, %v732
    %v734 = vrot.slane %v569, %v733
    %v735 = vsel %vm627, %v734, %v730
    %v736 = vlaneseq
    %v737 = vshrl.u32 %v736, 7
    %v738 = vsub.s32 %v629, %v737
    %v739 = vrot.slane %v570, %v738
    %v740 = vsel %vm634, %v739, %v735
    %v741 = vlaneseq
    %v742 = vshrl.u32 %v741, 7
    %v743 = vsub.s32 %v636, %v742
    %v744 = vrot.slane %v571, %v743
    %v745 = vsel %vm641, %v744, %v740
    %v746 = vlaneseq
    %v747 = vshrl.u32 %v746, 7
    %v748 = vsub.s32 %v643, %v747
    %v749 = vrot.slane %v572, %v748
    %v750 = vsel %vm648, %v749, %v745
    %v751 = vlaneseq
    %v752 = vshrl.u32 %v751, 7
    %v753 = vsub.s32 %v650, %v752
    %v754 = vrot.slane %v573, %v753
    %v755 = vsel %vm655, %v754, %v750
    %v756 = vlaneseq
    %v757 = vshrl.u32 %v756, 7
    %v758 = vsub.s32 %v657, %v757
    %v759 = vrot.slane %v574, %v758
    %v760 = vsel %vm662, %v759, %v755
    %v761 = vlaneseq
    %v762 = vshrl.u32 %v761, 7
    %v763 = vsub.s32 %v664, %v762
    %v764 = vrot.slane %v575, %v763
    %v765 = vsel %vm669, %v764, %v760
    %v766 = vlaneseq
    %v767 = vshrl.u32 %v766, 7
    %v768 = vsub.s32 %v671, %v767
    %v769 = vrot.slane %v576, %v768
    %v770 = vsel %vm676, %v769, %v765
    %v771 = vlaneseq
    %v772 = vshrl.u32 %v771, 7
    %v773 = vsub.s32 %v678, %v772
    %v774 = vrot.slane %v577, %v773
    %v775 = vsel %vm683, %v774, %v770
    %v776 = vlaneseq
    %v777 = vshrl.u32 %v776, 7
    %v778 = vsub.s32 %v685, %v777
    %v779 = vrot.slane %v578, %v778
    %v780 = vsel %vm690, %v779, %v775
    %v781 = vlaneseq
    %v782 = vshrl.u32 %v781, 7
    %v783 = vsub.s32 %v692, %v782
    %v784 = vrot.slane %v579, %v783
    %v785 = vsel %vm697, %v784, %v780
    %v786 = vlaneseq
    %v787 = vshrl.u32 %v786, 7
    %v788 = vsub.s32 %v699, %v787
    %v789 = vrot.slane %v580, %v788
    %v790 = vsel %vm704, %v789, %v785
    %v791 = vlaneseq
    %v792 = vshrl.u32 %v791, 7
    %v793 = vsub.s32 %v706, %v792
    %v794 = vrot.slane %v581, %v793
    %v795 = vsel %vm711, %v794, %v790
    %v796 = vlaneseq
    %v797 = vshrl.u32 %v796, 7
    %v798 = vsub.s32 %v713, %v797
    %v799 = vrot.slane %v582, %v798
    %v800 = vsel %vm718, %v799, %v795
    %v801 = vlaneseq
    %v802 = vshrl.u32 %v801, 7
    %v803 = vsub.s32 %v720, %v802
    %v804 = vrot.slane %v583, %v803
    %v805 = vsel %vm725, %v804, %v800
    %vm806 = vcmask 1041409
    %v807 = vsel %vm806, %v805, %v726
    %809 = vst [vmem:[#allocation5] sm:$0x3] %v807
    // Predicated region
    $region18: #{tpu_custom_call.1} parent=1 // pred_check
      _
    $region19: #{tpu_custom_call.1} parent=1 // pred_check_branch
      %811 = sbr.rel (0) target = $region21
    $region20: #{tpu_custom_call.1} parent=1 // pred_region
      %s813 = ssub.s32 32, 32
      %814 = vsyncadd [#allocation3], %s813
      %s816 = sshll.u32 [#allocation5], 4
      %s817 = int_to_ptr.vmem [resolvable:$true] %s816
      %819 = dma.vmem_to_hbm [thread:$0]  %s817, 32, %s3, [#allocation3]
    $region21: #{tpu_custom_call.1} parent=1 // pred_fallthru
      _
    // Predicated region
    $region22: #{tpu_custom_call.1} parent=1 // pred_check
      _
    $region23: #{tpu_custom_call.1} parent=1 // pred_check_branch
      %821 = sbr.rel (0) target = $region25
    $region24: #{tpu_custom_call.1} parent=1 // pred_region
      %822 = dma.done [#allocation3], 32
    $region25: #{tpu_custom_call.1} parent=1 // pred_fallthru
      _
    %823 = vsyncpa [#allocation3], 1
    %824 = vsyncpa [#allocation4], 1

</llo_original>
